<compile_context>
chip_gen: v7x
topology: tpu7x:2x2x1
jax: 0.10.0
libtpu: 0.0.40
codegen_flags: <defaults>
</compile_context>

<pallas_src>
import functools

import jax
import jax.numpy as jnp
from jax import lax
from jax.experimental import pallas as pl
from jax.experimental.pallas import tpu as pltpu


def _round_up(x, m):
    return ((x + m - 1) // m) * m


def _supcon_kernel(qa_ref, kt_ref, la_ref, lb_ref, o_ref,
                   m_ref, l_ref, sp_ref, cnt_ref, *,
                   tm, tn, n_anchor, n_contrast):
    i = pl.program_id(0)          # anchor-row tile   ("parallel")
    j = pl.program_id(1)          # contrast-col tile ("arbitrary", reduction)

    @pl.when(j == 0)
    def _init():
        m_ref[...] = jnp.full_like(m_ref, -1e30)
        l_ref[...] = jnp.zeros_like(l_ref)
        sp_ref[...] = jnp.zeros_like(sp_ref)
        cnt_ref[...] = jnp.zeros_like(cnt_ref)
        o_ref[...] = jnp.zeros_like(o_ref)

    # bf16 x bf16 -> f32 MXU matmul; 1/temperature already folded into qa.
    adc = jnp.dot(qa_ref[...], kt_ref[...],
                  preferred_element_type=jnp.float32)              # (TM, TN)

    row_ids = i * tm + lax.broadcasted_iota(jnp.int32, (tm, 1), 0)  # (TM, 1)
    col_ids = j * tn + lax.broadcasted_iota(jnp.int32, (1, tn), 1)  # (1, TN)
    denom_mask = (row_ids != col_ids) & (col_ids < n_contrast)      # (TM, TN)
    pos_mask = (la_ref[...] == lb_ref[...]) & denom_mask            # (TM, TN)

    # Online logsumexp over not-self, in-range contrast columns.  The running
    # max cancels analytically in log_prob, so any max >= the masked entries is
    # valid; use the masked tile max for stability.
    neg_big = jnp.float32(-1e30)
    tile_max = jnp.max(jnp.where(denom_mask, adc, neg_big), axis=1, keepdims=True)
    m_old = m_ref[...]
    m_new = jnp.maximum(m_old, tile_max)
    alpha = jnp.exp(m_old - m_new)
    exp_l = jnp.where(denom_mask, jnp.exp(adc - m_new), 0.0)
    l_ref[...] = alpha * l_ref[...] + jnp.sum(exp_l, axis=1, keepdims=True)
    m_ref[...] = m_new

    cnt_ref[...] += jnp.sum(pos_mask.astype(jnp.float32), axis=1, keepdims=True)
    sp_ref[...] += jnp.sum(jnp.where(pos_mask, adc, 0.0), axis=1, keepdims=True)

    @pl.when(j == pl.num_programs(1) - 1)
    def _finalize():
        cnt = cnt_ref[...]
        # log floored at 1e-30 and cnt clamped to 1: anchors with zero positives
        # contribute 0 instead of the reference's NaN (benign divergence).
        log_denom = m_ref[...] + jnp.log(jnp.maximum(l_ref[...], 1e-30))
        mean_lpp = (sp_ref[...] - cnt * log_denom) / jnp.maximum(cnt, 1.0)
        row_valid = row_ids < n_anchor
        o_ref[...] = jnp.where(row_valid, mean_lpp, 0.0)


def _vmem_limit_bytes(tm, tn, dp):
    anchor = 2 * tm * dp * 2                     # bf16, double-buffered
    contrast = 2 * dp * tn * 2                   # bf16, double-buffered
    labels = 2 * (tm * 128 + 8 * tn) * 4         # int32, lane/sublane padded
    out = 2 * tm * 128 * 4
    scratch = 4 * tm * 128 * 4
    interm = 8 * tm * tn * 4                     # live (TM,TN) f32 temporaries
    total = anchor + contrast + labels + out + scratch + interm
    # 2x margin, capped at 56 MiB so it still fits v7x's 64 MiB physical VMEM.
    return int(min(max(2 * total, 8 << 20), 56 << 20))


def supcon_loss(features, labels=None, mask=None, *, temperature=0.07,
                contrast_mode='all', base_temperature=0.07,
                tile_m=128, tile_n=512):
    """features: [bsz, n_views, ...]; labels: [bsz] int.  Returns scalar loss."""
    if features.ndim < 3:
        raise ValueError('`features` needs to be [bsz, n_views, ...]')
    if features.ndim > 3:
        features = features.reshape(features.shape[0], features.shape[1], -1)
    B, V, D = features.shape

    if labels is not None and mask is not None:
        raise ValueError('Cannot define both `labels` and `mask`')
    if mask is not None:
        # TODO(synk): arbitrary [bsz,bsz] masks are not expressible via
        # in-kernel label equality; only labels / SimCLR (eye) paths exist.
        raise NotImplementedError('explicit `mask` argument not supported')
    if labels is None:
        lab = jnp.arange(B, dtype=jnp.int32)           # SimCLR: eye(B) positives
    else:
        lab = jnp.asarray(labels, dtype=jnp.int32).reshape(-1)
        if lab.shape[0] != B:
            raise ValueError('Num of labels does not match num of features')

    # contrast_feature = cat(unbind(features, dim=1), 0) == transpose + reshape
    feats = features.astype(jnp.float32)
    cf = jnp.transpose(feats, (1, 0, 2)).reshape(V * B, D)
    lab_ext = jnp.tile(lab, V)
    Mc = V * B

    if contrast_mode == 'all':
        anchor, anchor_lab, Ma = cf, lab_ext, Mc
    elif contrast_mode == 'one':
        anchor, anchor_lab, Ma = cf[:B], lab, B
    else:
        raise ValueError('Unknown mode: {}'.format(contrast_mode))

    # Tiling: rows (anchors) in multiples of 16 (bf16 sublane packing), contrast
    # columns and embedding dim in multiples of 128 (lane / MXU alignment).
    TM = min(int(tile_m), _round_up(Ma, 16))
    Map = _round_up(Ma, TM)
    TN = min(int(tile_n), _round_up(Mc, 128))
    Mcp = _round_up(Mc, TN)
    Dp = _round_up(D, 128)

    # Fold 1/temperature into the anchor (f32), then cast both operands to bf16.
    qa = anchor * jnp.float32(1.0 / temperature)
    qa = jnp.pad(qa, ((0, Map - Ma), (0, Dp - D))).astype(jnp.bfloat16)
    kc = jnp.pad(cf, ((0, Mcp - Mc), (0, Dp - D))).astype(jnp.bfloat16)
    kt = kc.T                                            # (Dp, Mcp), K-major RHS

    la = jnp.pad(anchor_lab, (0, Map - Ma), constant_values=-1).reshape(Map, 1)
    lb = jnp.pad(lab_ext, (0, Mcp - Mc), constant_values=-2).reshape(1, Mcp)

    kernel = functools.partial(
        _supcon_kernel, tm=TM, tn=TN, n_anchor=Ma, n_contrast=Mc)

    # TODO(synk): sweep TM/TN per generation (v6e: TM=256, TN=1024-2048).
    mean_lpp = pl.pallas_call(
        kernel,
        out_shape=jax.ShapeDtypeStruct((Map, 1), jnp.float32),
        grid=(Map // TM, Mcp // TN),
        in_specs=[
            pl.BlockSpec((TM, Dp), lambda i, j: (i, 0)),   # anchor tile (bf16)
            pl.BlockSpec((Dp, TN), lambda i, j: (0, j)),   # contrast tile (bf16)
            pl.BlockSpec((TM, 1), lambda i, j: (i, 0)),    # anchor labels
            pl.BlockSpec((1, TN), lambda i, j: (0, j)),    # contrast labels
        ],
        out_specs=pl.BlockSpec((TM, 1), lambda i, j: (i, 0)),
        scratch_shapes=[pltpu.VMEM((TM, 1), jnp.float32)] * 4,
        compiler_params=pltpu.CompilerParams(
            dimension_semantics=("parallel", "arbitrary"),
            vmem_limit_bytes=_vmem_limit_bytes(TM, TN, Dp)),
    )(qa, kt, la, lb)

    scale = temperature / base_temperature
    return -scale * jnp.sum(mean_lpp) / Ma


def _reference(features, labels=None, temperature=0.07, contrast_mode='all',
               base_temperature=0.07):
    """Pure-JAX (f32) transcription of the PyTorch SupConLoss.forward."""
    B, V = features.shape[:2]
    feats = features.reshape(B, V, -1).astype(jnp.float32)
    D = feats.shape[-1]
    if labels is None:
        base_mask = jnp.eye(B, dtype=jnp.float32)
    else:
        lab = jnp.asarray(labels).reshape(-1, 1)
        base_mask = (lab == lab.T).astype(jnp.float32)
    cf = jnp.transpose(feats, (1, 0, 2)).reshape(V * B, D)
    if contrast_mode == 'one':
        anchor, anchor_count = feats[:, 0], 1
    else:
        anchor, anchor_count = cf, V
    adc = jnp.matmul(anchor, cf.T, precision=lax.Precision.HIGHEST) / temperature
    lmax = adc.max(axis=1, keepdims=True)
    logits = adc - lmax
    mask_rep = jnp.tile(base_mask, (anchor_count, V))
    Ma = anchor_count * B
    logits_mask = jnp.ones_like(mask_rep).at[jnp.arange(Ma), jnp.arange(Ma)].set(0.0)
    mask_rep = mask_rep * logits_mask
    exp_logits = jnp.exp(logits) * logits_mask
    log_prob = logits - jnp.log(exp_logits.sum(1, keepdims=True))
    mean_lpp = (mask_rep * log_prob).sum(1) / mask_rep.sum(1)
    loss = -(temperature / base_temperature) * mean_lpp
    return loss.reshape(anchor_count, B).mean()


if __name__ == "__main__":
    key = jax.random.PRNGKey(0)
    B, V, D = 8, 2, 32     # bsz, n_views, hidden

    kf, kl = jax.random.split(key)
    feats = jax.random.normal(kf, (B, V, D), dtype=jnp.float32)
    feats = feats / jnp.linalg.norm(feats, axis=-1, keepdims=True)  # unit-norm
    labels = jax.random.randint(kl, (B,), 0, 4, dtype=jnp.int32)

    # supervised, contrast_mode='all'  (bf16 MXU path -> loosened tolerance)
    loss = supcon_loss(feats, labels, temperature=0.07)
    jax.block_until_ready(loss)
    ref = _reference(feats, labels, temperature=0.07)
    assert jnp.allclose(loss, ref, rtol=5e-2, atol=5e-2), (loss, ref)

    # supervised, contrast_mode='one'
    loss_o = supcon_loss(feats, labels, temperature=0.07, contrast_mode='one')
    jax.block_until_ready(loss_o)
    ref_o = _reference(feats, labels, temperature=0.07, contrast_mode='one')
    assert jnp.allclose(loss_o, ref_o, rtol=5e-2, atol=5e-2), (loss_o, ref_o)

    # unsupervised (SimCLR) path: labels=None -> eye(B) positives
    loss_u = supcon_loss(feats, None, temperature=0.07)
    jax.block_until_ready(loss_u)
    ref_u = _reference(feats, None, temperature=0.07)
    assert jnp.allclose(loss_u, ref_u, rtol=5e-2, atol=5e-2), (loss_u, ref_u)

    print("KERNEL_OK")
</pallas_src>

<mosaic_0001>
module attributes {stable_mosaic.version = 11 : i64} {
  func.func @_supcon_kernel(%arg0: i32, %arg1: i32, %arg2: memref<16x128xbf16, #tpu.memory_space<vmem>>, %arg3: memref<128x128xbf16, #tpu.memory_space<vmem>>, %arg4: memref<16x1xi32, #tpu.memory_space<vmem>>, %arg5: memref<1x128xi32, #tpu.memory_space<vmem>>, %arg6: memref<16x1xf32, #tpu.memory_space<vmem>>, %arg7: memref<16x1xf32, #tpu.memory_space<vmem>>, %arg8: memref<16x1xf32, #tpu.memory_space<vmem>>, %arg9: memref<16x1xf32, #tpu.memory_space<vmem>>, %arg10: memref<16x1xf32, #tpu.memory_space<vmem>>) attributes {dimension_semantics = [#tpu.dimension_semantics<parallel>, #tpu.dimension_semantics<arbitrary>], iteration_bounds = array<i64: 1, 1>, scalar_prefetch = 0 : i64, scratch_operands = 4 : i64, tpu.core_type = #tpu.core_type<tc>, window_params = [{transform_indices = @transform_0, window_bounds = array<i64: 16, 128>}, {transform_indices = @transform_1, window_bounds = array<i64: 128, 128>}, {transform_indices = @transform_2, window_bounds = array<i64: 16, 1>}, {transform_indices = @transform_3, window_bounds = array<i64: 1, 128>}, {transform_indices = @transform_4, window_bounds = array<i64: 16, 1>}]} {
    %c0_i32 = arith.constant 0 : i32
    %0 = arith.cmpi eq, %arg1, %c0_i32 : i32
    %1 = arith.extui %0 : i1 to i32
    %c0_i32_0 = arith.constant 0 : i32
    %2 = arith.cmpi ne, %1, %c0_i32_0 : i32
    scf.if %2 {
      %cst_34 = arith.constant -1.000000e+30 : f32
      %64 = vector.broadcast %cst_34 : f32 to vector<16x1xf32>
      %c0_35 = arith.constant 0 : index
      %c0_36 = arith.constant 0 : index
      %65 = vector.load %arg7[%c0_35, %c0_36] : memref<16x1xf32, #tpu.memory_space<vmem>>, vector<16x1xf32>
      tpu.vector_store %arg7[%c0_35, %c0_36], %64 {strides = array<i32>} : memref<16x1xf32, #tpu.memory_space<vmem>>, vector<16x1xf32>,
      %cst_37 = arith.constant 0.000000e+00 : f32
      %66 = vector.broadcast %cst_37 : f32 to vector<16x1xf32>
      %c0_38 = arith.constant 0 : index
      %c0_39 = arith.constant 0 : index
      %67 = vector.load %arg8[%c0_38, %c0_39] : memref<16x1xf32, #tpu.memory_space<vmem>>, vector<16x1xf32>
      tpu.vector_store %arg8[%c0_38, %c0_39], %66 {strides = array<i32>} : memref<16x1xf32, #tpu.memory_space<vmem>>, vector<16x1xf32>,
      %cst_40 = arith.constant 0.000000e+00 : f32
      %68 = vector.broadcast %cst_40 : f32 to vector<16x1xf32>
      %c0_41 = arith.constant 0 : index
      %c0_42 = arith.constant 0 : index
      %69 = vector.load %arg9[%c0_41, %c0_42] : memref<16x1xf32, #tpu.memory_space<vmem>>, vector<16x1xf32>
      tpu.vector_store %arg9[%c0_41, %c0_42], %68 {strides = array<i32>} : memref<16x1xf32, #tpu.memory_space<vmem>>, vector<16x1xf32>,
      %cst_43 = arith.constant 0.000000e+00 : f32
      %70 = vector.broadcast %cst_43 : f32 to vector<16x1xf32>
      %c0_44 = arith.constant 0 : index
      %c0_45 = arith.constant 0 : index
      %71 = vector.load %arg10[%c0_44, %c0_45] : memref<16x1xf32, #tpu.memory_space<vmem>>, vector<16x1xf32>
      tpu.vector_store %arg10[%c0_44, %c0_45], %70 {strides = array<i32>} : memref<16x1xf32, #tpu.memory_space<vmem>>, vector<16x1xf32>,
      %cst_46 = arith.constant 0.000000e+00 : f32
      %72 = vector.broadcast %cst_46 : f32 to vector<16x1xf32>
      %c0_47 = arith.constant 0 : index
      %c0_48 = arith.constant 0 : index
      %73 = vector.load %arg6[%c0_47, %c0_48] : memref<16x1xf32, #tpu.memory_space<vmem>>, vector<16x1xf32>
      tpu.vector_store %arg6[%c0_47, %c0_48], %72 {strides = array<i32>} : memref<16x1xf32, #tpu.memory_space<vmem>>, vector<16x1xf32>,
    } else {
    }
    %c0 = arith.constant 0 : index
    %c0_1 = arith.constant 0 : index
    %3 = vector.load %arg2[%c0, %c0_1] : memref<16x128xbf16, #tpu.memory_space<vmem>>, vector<16x128xbf16>
    %c0_2 = arith.constant 0 : index
    %c0_3 = arith.constant 0 : index
    %4 = vector.load %arg3[%c0_2, %c0_3] : memref<128x128xbf16, #tpu.memory_space<vmem>>, vector<128x128xbf16>
    %cst = arith.constant dense<0.000000e+00> : vector<16x128xf32>
    %5 = tpu.matmul %3, %4, %cst {dimension_numbers = #tpu.dot_dimension_numbers<[1], [0], [0], [1], [0, 0, 1, 1], [], []>} : vector<16x128xbf16>, vector<128x128xbf16>, vector<16x128xf32> -> vector<16x128xf32>
    %c16_i32 = arith.constant 16 : i32
    %6 = arith.muli %arg0, %c16_i32 : i32
    %7 = tpu.iota {dimensions = array<i32: 0>} : vector<16x1xi32>
    %8 = vector.broadcast %6 : i32 to vector<16x1xi32>
    %9 = arith.addi %8, %7 : vector<16x1xi32>
    %c128_i32 = arith.constant 128 : i32
    %10 = arith.muli %arg1, %c128_i32 : i32
    %11 = tpu.iota {dimensions = array<i32: 1>} : vector<1x128xi32>
    %12 = vector.broadcast %10 : i32 to vector<1x128xi32>
    %13 = arith.addi %12, %11 : vector<1x128xi32>
    %14 = vector.broadcast %9 : vector<16x1xi32> to vector<16x128xi32>
    %15 = vector.broadcast %13 : vector<1x128xi32> to vector<16x128xi32>
    %16 = arith.cmpi ne, %14, %15 : vector<16x128xi32>
    %c16_i32_4 = arith.constant 16 : i32
    %17 = vector.broadcast %c16_i32_4 : i32 to vector<1x128xi32>
    %18 = arith.cmpi slt, %13, %17 : vector<1x128xi32>
    %19 = vector.broadcast %18 : vector<1x128xi1> to vector<16x128xi1>
    %20 = arith.andi %16, %19 : vector<16x128xi1>
    %c0_5 = arith.constant 0 : index
    %c0_6 = arith.constant 0 : index
    %21 = vector.load %arg4[%c0_5, %c0_6] : memref<16x1xi32, #tpu.memory_space<vmem>>, vector<16x1xi32>
    %c0_7 = arith.constant 0 : index
    %c0_8 = arith.constant 0 : index
    %22 = vector.load %arg5[%c0_7, %c0_8] : memref<1x128xi32, #tpu.memory_space<vmem>>, vector<1x128xi32>
    %23 = vector.broadcast %21 : vector<16x1xi32> to vector<16x128xi32>
    %24 = vector.broadcast %22 : vector<1x128xi32> to vector<16x128xi32>
    %25 = arith.cmpi eq, %23, %24 : vector<16x128xi32>
    %26 = arith.andi %25, %20 : vector<16x128xi1>
    %cst_9 = arith.constant -1.000000e+30 : f32
    %27 = vector.broadcast %cst_9 : f32 to vector<16x128xf32>
    %28 = arith.select %20, %5, %27 : vector<16x128xi1>, vector<16x128xf32>
    %cst_10 = arith.constant dense<0xFF800000> : vector<16xf32>
    %29 = vector.multi_reduction <maximumf>, %28, %cst_10 [1] : vector<16x128xf32> to vector<16xf32>
    %30 = vector.shape_cast %29 : vector<16xf32> to vector<16x1xf32>
    %c0_11 = arith.constant 0 : index
    %c0_12 = arith.constant 0 : index
    %31 = vector.load %arg7[%c0_11, %c0_12] : memref<16x1xf32, #tpu.memory_space<vmem>>, vector<16x1xf32>
    %32 = arith.maximumf %31, %30 : vector<16x1xf32>
    %33 = arith.subf %31, %32 : vector<16x1xf32>
    %34 = math.exp %33 : vector<16x1xf32>
    %35 = vector.broadcast %32 : vector<16x1xf32> to vector<16x128xf32>
    %36 = arith.subf %5, %35 : vector<16x128xf32>
    %37 = math.exp %36 : vector<16x128xf32>
    %cst_13 = arith.constant 0.000000e+00 : f32
    %38 = vector.broadcast %cst_13 : f32 to vector<16x128xf32>
    %39 = arith.select %20, %37, %38 : vector<16x128xi1>, vector<16x128xf32>
    %c0_14 = arith.constant 0 : index
    %c0_15 = arith.constant 0 : index
    %40 = vector.load %arg8[%c0_14, %c0_15] : memref<16x1xf32, #tpu.memory_space<vmem>>, vector<16x1xf32>
    %41 = arith.mulf %34, %40 : vector<16x1xf32>
    %cst_16 = arith.constant dense<0.000000e+00> : vector<16xf32>
    %42 = vector.multi_reduction <add>, %39, %cst_16 [1] : vector<16x128xf32> to vector<16xf32>
    %43 = vector.shape_cast %42 : vector<16xf32> to vector<16x1xf32>
    %44 = arith.addf %41, %43 : vector<16x1xf32>
    %c0_17 = arith.constant 0 : index
    %c0_18 = arith.constant 0 : index
    %45 = vector.load %arg8[%c0_17, %c0_18] : memref<16x1xf32, #tpu.memory_space<vmem>>, vector<16x1xf32>
    tpu.vector_store %arg8[%c0_17, %c0_18], %44 {strides = array<i32>} : memref<16x1xf32, #tpu.memory_space<vmem>>, vector<16x1xf32>,
    %c0_19 = arith.constant 0 : index
    %c0_20 = arith.constant 0 : index
    %46 = vector.load %arg7[%c0_19, %c0_20] : memref<16x1xf32, #tpu.memory_space<vmem>>, vector<16x1xf32>
    tpu.vector_store %arg7[%c0_19, %c0_20], %32 {strides = array<i32>} : memref<16x1xf32, #tpu.memory_space<vmem>>, vector<16x1xf32>,
    %c0_21 = arith.constant 0 : index
    %c0_22 = arith.constant 0 : index
    %47 = vector.load %arg10[%c0_21, %c0_22] : memref<16x1xf32, #tpu.memory_space<vmem>>, vector<16x1xf32>
    %48 = arith.extui %26 : vector<16x128xi1> to vector<16x128xi32>
    %49 = arith.sitofp %48 : vector<16x128xi32> to vector<16x128xf32>
    %cst_23 = arith.constant dense<0.000000e+00> : vector<16xf32>
    %50 = vector.multi_reduction <add>, %49, %cst_23 [1] : vector<16x128xf32> to vector<16xf32>
    %51 = vector.shape_cast %50 : vector<16xf32> to vector<16x1xf32>
    %52 = arith.addf %47, %51 : vector<16x1xf32>
    %c0_24 = arith.constant 0 : index
    %c0_25 = arith.constant 0 : index
    %53 = vector.load %arg10[%c0_24, %c0_25] : memref<16x1xf32, #tpu.memory_space<vmem>>, vector<16x1xf32>
    tpu.vector_store %arg10[%c0_24, %c0_25], %52 {strides = array<i32>} : memref<16x1xf32, #tpu.memory_space<vmem>>, vector<16x1xf32>,
    %c0_26 = arith.constant 0 : index
    %c0_27 = arith.constant 0 : index
    %54 = vector.load %arg9[%c0_26, %c0_27] : memref<16x1xf32, #tpu.memory_space<vmem>>, vector<16x1xf32>
    %cst_28 = arith.constant 0.000000e+00 : f32
    %55 = vector.broadcast %cst_28 : f32 to vector<16x128xf32>
    %56 = arith.select %26, %5, %55 : vector<16x128xi1>, vector<16x128xf32>
    %cst_29 = arith.constant dense<0.000000e+00> : vector<16xf32>
    %57 = vector.multi_reduction <add>, %56, %cst_29 [1] : vector<16x128xf32> to vector<16xf32>
    %58 = vector.shape_cast %57 : vector<16xf32> to vector<16x1xf32>
    %59 = arith.addf %54, %58 : vector<16x1xf32>
    %c0_30 = arith.constant 0 : index
    %c0_31 = arith.constant 0 : index
    %60 = vector.load %arg9[%c0_30, %c0_31] : memref<16x1xf32, #tpu.memory_space<vmem>>, vector<16x1xf32>
    tpu.vector_store %arg9[%c0_30, %c0_31], %59 {strides = array<i32>} : memref<16x1xf32, #tpu.memory_space<vmem>>, vector<16x1xf32>,
    %c0_i32_32 = arith.constant 0 : i32
    %61 = arith.cmpi eq, %arg1, %c0_i32_32 : i32
    %62 = arith.extui %61 : i1 to i32
    %c0_i32_33 = arith.constant 0 : i32
    %63 = arith.cmpi ne, %62, %c0_i32_33 : i32
    scf.if %63 {
      %c0_34 = arith.constant 0 : index
      %c0_35 = arith.constant 0 : index
      %64 = vector.load %arg10[%c0_34, %c0_35] : memref<16x1xf32, #tpu.memory_space<vmem>>, vector<16x1xf32>
      %c0_36 = arith.constant 0 : index
      %c0_37 = arith.constant 0 : index
      %65 = vector.load %arg7[%c0_36, %c0_37] : memref<16x1xf32, #tpu.memory_space<vmem>>, vector<16x1xf32>
      %c0_38 = arith.constant 0 : index
      %c0_39 = arith.constant 0 : index
      %66 = vector.load %arg8[%c0_38, %c0_39] : memref<16x1xf32, #tpu.memory_space<vmem>>, vector<16x1xf32>
      %cst_40 = arith.constant 1.000000e-30 : f32
      %67 = vector.broadcast %cst_40 : f32 to vector<16x1xf32>
      %68 = arith.maximumf %66, %67 : vector<16x1xf32>
      %69 = math.log %68 : vector<16x1xf32>
      %70 = arith.addf %65, %69 : vector<16x1xf32>
      %c0_41 = arith.constant 0 : index
      %c0_42 = arith.constant 0 : index
      %71 = vector.load %arg9[%c0_41, %c0_42] : memref<16x1xf32, #tpu.memory_space<vmem>>, vector<16x1xf32>
      %72 = arith.mulf %64, %70 : vector<16x1xf32>
      %73 = arith.subf %71, %72 : vector<16x1xf32>
      %cst_43 = arith.constant 1.000000e+00 : f32
      %74 = vector.broadcast %cst_43 : f32 to vector<16x1xf32>
      %75 = arith.maximumf %64, %74 : vector<16x1xf32>
      %76 = arith.divf %73, %75 : vector<16x1xf32>
      %c16_i32_44 = arith.constant 16 : i32
      %77 = vector.broadcast %c16_i32_44 : i32 to vector<16x1xi32>
      %78 = arith.cmpi slt, %9, %77 : vector<16x1xi32>
      %cst_45 = arith.constant 0.000000e+00 : f32
      %79 = vector.broadcast %cst_45 : f32 to vector<16x1xf32>
      %80 = arith.select %78, %76, %79 : vector<16x1xi1>, vector<16x1xf32>
      %c0_46 = arith.constant 0 : index
      %c0_47 = arith.constant 0 : index
      %81 = vector.load %arg6[%c0_46, %c0_47] : memref<16x1xf32, #tpu.memory_space<vmem>>, vector<16x1xf32>
      tpu.vector_store %arg6[%c0_46, %c0_47], %80 {strides = array<i32>} : memref<16x1xf32, #tpu.memory_space<vmem>>, vector<16x1xf32>,
    } else {
    }
    return
  }
  func.func @transform_0(%arg0: i32, %arg1: i32) -> (i32, i32) {
    %c0_i32 = arith.constant 0 : i32
    %c0_i32_0 = arith.constant 0 : i32
    return %arg0, %c0_i32 : i32, i32
  }
  func.func @transform_1(%arg0: i32, %arg1: i32) -> (i32, i32) {
    %c0_i32 = arith.constant 0 : i32
    %c0_i32_0 = arith.constant 0 : i32
    return %c0_i32, %arg1 : i32, i32
  }
  func.func @transform_2(%arg0: i32, %arg1: i32) -> (i32, i32) {
    %c0_i32 = arith.constant 0 : i32
    %c0_i32_0 = arith.constant 0 : i32
    return %arg0, %c0_i32 : i32, i32
  }
  func.func @transform_3(%arg0: i32, %arg1: i32) -> (i32, i32) {
    %c0_i32 = arith.constant 0 : i32
    %c0_i32_0 = arith.constant 0 : i32
    return %c0_i32, %arg1 : i32, i32
  }
  func.func @transform_4(%arg0: i32, %arg1: i32) -> (i32, i32) {
    %c0_i32 = arith.constant 0 : i32
    %c0_i32_0 = arith.constant 0 : i32
    return %arg0, %c0_i32 : i32, i32
  }
}

</mosaic_0001>

<llo_original>
// kernel: tpu_custom_call.1
$region0: #{tpu_custom_call.1}
  #allocation0 [shape = 'u32[]', space=smem, size = 0x4, offset = 0x4, fixed_abs, tag = 'smem constant byte address 0x4 - core index']
  #allocation1 [shape = 'u32[144,128]{1,0:T(1,128)}', space=vmem, size = 0x12000, scoped, tag = 'internal scratch']
  #allocation2 [shape = 'f32[16,1]{1,0:T(8,128)}', space=vmem, size = 0x2000, scoped, tag = 'scratch operand']
  #allocation3 [shape = 'f32[16,1]{1,0:T(8,128)}', space=vmem, size = 0x2000, scoped, tag = 'scratch operand']
  #allocation4 [shape = 'f32[16,1]{1,0:T(8,128)}', space=vmem, size = 0x2000, scoped, tag = 'scratch operand']
  #allocation5 [shape = 'f32[16,1]{1,0:T(8,128)}', space=vmem, size = 0x2000, scoped, tag = 'scratch operand']
  %s0 = inlined_call_operand.vmem [shape: bf16[16,128], index: 0, kind: input, shape index: {}]
  %s1 = inlined_call_operand.hbm [shape: bf16[128,128], index: 1, kind: input, shape index: {}]
  %s2 = inlined_call_operand.vmem [shape: s32[16,1], index: 2, kind: input, shape index: {}]
  %s3 = inlined_call_operand.vmem [shape: s32[1,128], index: 3, kind: input, shape index: {}]
  %s4 = inlined_call_operand.vmem [shape: f32[16,1], index: 4, kind: output, shape index: {}]
  %s5 = sld [smem:[#allocation0]]
  $region38: #{tpu_custom_call.1} parent=0
    _
  %s7 = ssub.s32 1, %s5
  %s8 = scalar_select 0, %s7, %s5
  $region1: #{tpu_custom_call.1} parent=0
    #allocation6 [shape = 'u8[32768]{0}', space=vmem, size = 0x8000, scoped, tag = 'input window, operand 1, single buffered']
    #allocation7 [shape = 's32[1]{0}', space=sflag, size = 0x4, scoped, tag = 'scoped memory for tpu_custom_call.1']
    %9 = vsyncpa [#allocation7], 0
    // Predicated region
    $region2: #{tpu_custom_call.1} parent=1 // pred_check
      _
    $region3: #{tpu_custom_call.1} parent=1 // pred_check_branch
      %11 = sbr.rel (0) target = $region5
    $region4: #{tpu_custom_call.1} parent=1 // pred_region
      _
    $region5: #{tpu_custom_call.1} parent=1 // pred_fallthru
      _
    // Predicated region
    $region6: #{tpu_custom_call.1} parent=1 // pred_check
      _
    $region7: #{tpu_custom_call.1} parent=1 // pred_check_branch
      %13 = sbr.rel (0) target = $region9
    $region8: #{tpu_custom_call.1} parent=1 // pred_region
      %s15 = ssub.s32 1024, 1024
      %16 = vsyncadd [#allocation7], %s15
      %s17 = sshll.u32 [#allocation6], 4
      %s18 = int_to_ptr.vmem [resolvable:$true] %s17
      %23 = dma.hbm_to_vmem [thread:$0]  %s1, 1024, %s18, [#allocation7], 64, 64, 4
    $region9: #{tpu_custom_call.1} parent=1 // pred_fallthru
      _
    // Predicated region
    $region10: #{tpu_custom_call.1} parent=1 // pred_check
      _
    $region11: #{tpu_custom_call.1} parent=1 // pred_check_branch
      %25 = sbr.rel (0) target = $region13
    $region12: #{tpu_custom_call.1} parent=1 // pred_region
      _
    $region13: #{tpu_custom_call.1} parent=1 // pred_fallthru
      _
    // Predicated region
    $region14: #{tpu_custom_call.1} parent=1 // pred_check
      _
    $region15: #{tpu_custom_call.1} parent=1 // pred_check_branch
      %27 = sbr.rel (0) target = $region17
    $region16: #{tpu_custom_call.1} parent=1 // pred_region
      _
    $region17: #{tpu_custom_call.1} parent=1 // pred_fallthru
      _
    // Predicated region
    $region18: #{tpu_custom_call.1} parent=1 // pred_check
      _
    $region19: #{tpu_custom_call.1} parent=1 // pred_check_branch
      %29 = sbr.rel (0) target = $region21
    $region20: #{tpu_custom_call.1} parent=1 // pred_region
      %30 = dma.done [#allocation7], 1024
    $region21: #{tpu_custom_call.1} parent=1 // pred_fallthru
      _
    %p32 = scmp.eq.s32.totalorder 0, 0
    // Predicated region
    $region22: #{tpu_custom_call.1} parent=1 // pred_check
      %p33 = pneg %p32
    $region23: #{tpu_custom_call.1} parent=1 // pred_check_branch
      %35 = sbr.rel (%p33) target = $region25
    $region24: #{tpu_custom_call.1} parent=1 // pred_region
      %vm36 = vcmask 7168
      %37 = vst.msk [vmem:[#allocation2] sm:$0xff] %vm36, -1e+30
      %38 = vst.msk [vmem:[#allocation2 + $0x8] sm:$0xff] %vm36, -1e+30
      %39 = vst.msk [vmem:[#allocation3] sm:$0xff] %vm36, 0.0
      %40 = vst.msk [vmem:[#allocation3 + $0x8] sm:$0xff] %vm36, 0.0
      %41 = vst.msk [vmem:[#allocation4] sm:$0xff] %vm36, 0.0
      %42 = vst.msk [vmem:[#allocation4 + $0x8] sm:$0xff] %vm36, 0.0
      %43 = vst.msk [vmem:[#allocation5] sm:$0xff] %vm36, 0.0
      %44 = vst.msk [vmem:[#allocation5 + $0x8] sm:$0xff] %vm36, 0.0
      %45 = vst.msk [vmem:[%s4] sm:$0xff] %vm36, 0.0
      %46 = vst.msk [vmem:[%s4 + $0x8] sm:$0xff] %vm36, 0.0
    $region25: #{tpu_custom_call.1} parent=1 // pred_fallthru
      _
    %v47 = vld [vmem:[%s0] sm:$0xf]
    %v48 = vld [vmem:[%s0 + $0x4] sm:$0xf]
    %v49 = vld [vmem:[#allocation6] sm:$0xf]
    %v50 = vld [vmem:[#allocation6 + $0x4] sm:$0xf]
    %v51 = vld [vmem:[#allocation6 + $0x8] sm:$0xf]
    %v52 = vld [vmem:[#allocation6 + $0xc] sm:$0xf]
    %v53 = vld [vmem:[#allocation6 + $0x10] sm:$0xf]
    %v54 = vld [vmem:[#allocation6 + $0x14] sm:$0xf]
    %v55 = vld [vmem:[#allocation6 + $0x18] sm:$0xf]
    %v56 = vld [vmem:[#allocation6 + $0x1c] sm:$0xf]
    %v57 = vld [vmem:[#allocation6 + $0x20] sm:$0xf]
    %v58 = vld [vmem:[#allocation6 + $0x24] sm:$0xf]
    %v59 = vld [vmem:[#allocation6 + $0x28] sm:$0xf]
    %v60 = vld [vmem:[#allocation6 + $0x2c] sm:$0xf]
    %v61 = vld [vmem:[#allocation6 + $0x30] sm:$0xf]
    %v62 = vld [vmem:[#allocation6 + $0x34] sm:$0xf]
    %v63 = vld [vmem:[#allocation6 + $0x38] sm:$0xf]
    %v64 = vld [vmem:[#allocation6 + $0x3c] sm:$0xf]
    %v67 = vunpack.c.l.b16 %v47
    %v68 = vunpack.c.l.b16 %v48
    %v69 = vpack.c.b16 %v68, %v67
    %v87 = vunpack.c.l.b16 %v49
    %v88 = vunpack.c.l.b16 %v50
    %v89 = vunpack.c.l.b16 %v51
    %v90 = vunpack.c.l.b16 %v52
    %v91 = vunpack.c.l.b16 %v53
    %v92 = vunpack.c.l.b16 %v54
    %v93 = vunpack.c.l.b16 %v55
    %v94 = vunpack.c.l.b16 %v56
    %v95 = vunpack.c.l.b16 %v57
    %v96 = vunpack.c.l.b16 %v58
    %v97 = vunpack.c.l.b16 %v59
    %v98 = vunpack.c.l.b16 %v60
    %v99 = vunpack.c.l.b16 %v61
    %v100 = vunpack.c.l.b16 %v62
    %v101 = vunpack.c.l.b16 %v63
    %v102 = vunpack.c.l.b16 %v64
    %v103 = vpack.c.b16 %v88, %v87
    %v104 = vpack.c.b16 %v90, %v89
    %v105 = vpack.c.b16 %v92, %v91
    %v106 = vpack.c.b16 %v94, %v93
    %v107 = vpack.c.b16 %v96, %v95
    %v108 = vpack.c.b16 %v98, %v97
    %v109 = vpack.c.b16 %v100, %v99
    %v110 = vpack.c.b16 %v102, %v101
    %119 = vmatprep.subr.bf16.mxu0 0
    %120 = vmatpush1.bf16.msra.mxu0 %v103
    %121 = vmatprep.subr.bf16.mxu0 0
    %122 = vmatpush1.bf16.msra.mxu0 %v104
    %123 = vmatprep.subr.bf16.mxu0 0
    %124 = vmatpush1.bf16.msra.mxu0 %v105
    %125 = vmatprep.subr.bf16.mxu0 0
    %126 = vmatpush1.bf16.msra.mxu0 %v106
    %127 = vmatprep.subr.bf16.mxu0 0
    %128 = vmatpush1.bf16.msra.mxu0 %v107
    %129 = vmatprep.subr.bf16.mxu0 0
    %130 = vmatpush1.bf16.msra.mxu0 %v108
    %131 = vmatprep.subr.bf16.mxu0 0
    %132 = vmatpush1.bf16.msra.mxu0 %v109
    %133 = vmatprep.subr.bf16.mxu0 0
    %134 = vmatpush1.bf16.msra.mxu0 %v110
    %135 = vmatprep.subr.bf16.mxu0 0
    %136 = vmatpush1.bf16.msra.mxu0 0
    %137 = vmatprep.subr.bf16.mxu0 0
    %138 = vmatpush1.bf16.msra.mxu0 0
    %139 = vmatprep.subr.bf16.mxu0 0
    %140 = vmatpush1.bf16.msra.mxu0 0
    %141 = vmatprep.subr.bf16.mxu0 0
    %142 = vmatpush1.bf16.msra.mxu0 0
    %143 = vmatprep.subr.bf16.mxu0 0
    %144 = vmatpush1.bf16.msra.mxu0 0
    %145 = vmatprep.subr.bf16.mxu0 0
    %146 = vmatpush1.bf16.msra.mxu0 0
    %147 = vmatprep.subr.bf16.mxu0 0
    %148 = vmatpush1.bf16.msra.mxu0 0
    %149 = vmatprep.subr.bf16.mxu0 0
    %150 = vmatpush1.bf16.msra.mxu0 0
    %151 = vmatprep.mubr.bf16.mxu0 0
    %152 = vmatmul.mubr.bf16.gmra.mrb[0].mxu0 %v69
    %v153 = vpop.f32.mrb[0].mxu0
    %v154 = vadd.f32 0.0, %v153
    %v155 = vpop.f32.mrb[0].mxu0
    %v156 = vpop.f32.mrb[0].mxu0
    %v157 = vadd.f32 0.0, %v156
    %v158 = vpop.f32.mrb[0].mxu0
    %159 = vdwg.mxu0
    %s160 = smul.u32 0, 16
    %v161 = vlaneseq
    %v162 = vshrl.u32 %v161, 7
    %v163 = vadd.s32 %v162, 8
    %v164 = vstv %s160
    %v165 = vadd.s32 %v164, %v162
    %v166 = vadd.s32 %v164, %v163
    %s167 = smul.u32 0, 128
    %v168 = vlaneseq
    %v169 = vand.u32 %v168, 127
    %v170 = vstv %s167
    %v171 = vadd.s32 %v170, %v169
    %vm172 = vcmp.ne.s32.totalorder %v165, %v171
    %vm173 = vcmp.ne.s32.totalorder %v166, %v171
    %vm174 = vcmp.lt.s32.totalorder %v171, 16
    %v175 = vsel %vm174, 1, 0
    %vm176 = vcmp.eq.s32.totalorder %v175, 1
    %vm177 = vmand %vm172, %vm176
    %vm178 = vmand %vm173, %vm176
    %v179 = vld [vmem:[%s2] sm:$0xff]
    %v180 = vld [vmem:[%s2 + $0x8] sm:$0xff]
    %v181 = vld [vmem:[%s3] sm:$0x1]
    %182 = vset.pattern.permute.xlu0 0
    %183 = vperm.xlu0 %182, %v179
    %v184 = vpop.permute.xlu0 %183
    %185 = vset.pattern.permute.xlu0 0
    %186 = vperm.xlu0 %185, %v180
    %v187 = vpop.permute.xlu0 %186
    %v188 = vlaneseq
    %v189 = vshrl.u32 %v188, 7
    %v190 = vsub.s32 0, %v189
    %v191 = vrot.slane %v181, %v190
    %vm192 = vcmp.eq.s32.totalorder %v184, %v191
    %vm193 = vcmp.eq.s32.totalorder %v187, %v191
    %vm194 = vmand %vm192, %vm177
    %vm195 = vmand %vm193, %vm178
    %v196 = vsel %vm177, %v154, -1e+30
    %v197 = vsel %vm178, %v157, -1e+30
    %198 = vmax.xlane.f32.xlu0 %v196
    %v199 = vpop.xlane.xlu0 %198
    %200 = vmax.xlane.f32.xlu0 %v197
    %v201 = vpop.xlane.xlu0 %200
    %v202 = vld [vmem:[#allocation2] sm:$0xff]
    %v203 = vld [vmem:[#allocation2 + $0x8] sm:$0xff]
    %v204 = vmax.f32 %v202, %v199
    %v205 = vmax.f32 %v203, %v201
    %v206 = vsub.f32 %v202, %v204
    %v207 = vsub.f32 %v203, %v205
    %v208 = vmul.f32 %v206, 1.442695
    %v209 = vpow.pop %v208
    %v210 = vmul.f32 %v207, 1.442695
    %v211 = vpow.pop %v210
    %213 = vset.pattern.permute.xlu0 0
    %214 = vperm.xlu0 %213, %v204
    %v215 = vpop.permute.xlu0 %214
    %218 = vset.pattern.permute.xlu0 0
    %219 = vperm.xlu0 %218, %v205
    %v220 = vpop.permute.xlu0 %219
    %v222 = vsub.f32 %v154, %v215
    %v223 = vsub.f32 %v157, %v220
    %v224 = vmul.f32 %v222, 1.442695
    %v225 = vpow.pop %v224
    %v226 = vmul.f32 %v223, 1.442695
    %v227 = vpow.pop %v226
    %v228 = vsel %vm177, %v225, 0.0
    %v229 = vsel %vm178, %v227, 0.0
    %v230 = vld [vmem:[#allocation3] sm:$0xff]
    %v231 = vld [vmem:[#allocation3 + $0x8] sm:$0xff]
    %v232 = vmul.f32 %v209, %v230
    %v233 = vmul.f32 %v211, %v231
    %234 = vadd.xlane.f32.xlu0 %v228
    %v235 = vpop.xlane.xlu0 %234
    %236 = vadd.xlane.f32.xlu0 %v229
    %v237 = vpop.xlane.xlu0 %236
    %v238 = vadd.f32 %v232, %v235
    %v239 = vadd.f32 %v233, %v237
    %vm240 = vcmask 7168
    %241 = vst.msk [vmem:[#allocation3] sm:$0xff] %vm240, %v238
    %242 = vst.msk [vmem:[#allocation3 + $0x8] sm:$0xff] %vm240, %v239
    %243 = vst.msk [vmem:[#allocation2] sm:$0xff] %vm240, %v204
    %244 = vst.msk [vmem:[#allocation2 + $0x8] sm:$0xff] %vm240, %v205
    %v245 = vld [vmem:[#allocation5] sm:$0xff]
    %v246 = vld [vmem:[#allocation5 + $0x8] sm:$0xff]
    %v247 = vsel %vm194, 1, 0
    %v248 = vsel %vm195, 1, 0
    %v249 = vcvt.s32.f32 %v247
    %v250 = vcvt.s32.f32 %v248
    %251 = vadd.xlane.f32.xlu0 %v249
    %v252 = vpop.xlane.xlu0 %251
    %253 = vadd.xlane.f32.xlu0 %v250
    %v254 = vpop.xlane.xlu0 %253
    %v255 = vadd.f32 %v245, %v252
    %v256 = vadd.f32 %v246, %v254
    %257 = vst.msk [vmem:[#allocation5] sm:$0xff] %vm240, %v255
    %258 = vst.msk [vmem:[#allocation5 + $0x8] sm:$0xff] %vm240, %v256
    %v259 = vld [vmem:[#allocation4] sm:$0xff]
    %v260 = vld [vmem:[#allocation4 + $0x8] sm:$0xff]
    %v261 = vsel %vm194, %v154, 0.0
    %v262 = vsel %vm195, %v157, 0.0
    %263 = vadd.xlane.f32.xlu0 %v261
    %v264 = vpop.xlane.xlu0 %263
    %265 = vadd.xlane.f32.xlu0 %v262
    %v266 = vpop.xlane.xlu0 %265
    %v267 = vadd.f32 %v259, %v264
    %v268 = vadd.f32 %v260, %v266
    %269 = vst.msk [vmem:[#allocation4] sm:$0xff] %vm240, %v267
    %270 = vst.msk [vmem:[#allocation4 + $0x8] sm:$0xff] %vm240, %v268
    // Predicated region
    $region26: #{tpu_custom_call.1} parent=1 // pred_check
      %p271 = pneg %p32
    $region27: #{tpu_custom_call.1} parent=1 // pred_check_branch
      %273 = sbr.rel (%p271) target = $region29
    $region28: #{tpu_custom_call.1} parent=1 // pred_region
      %v274 = vld [vmem:[#allocation5] sm:$0xff]
      %v275 = vld [vmem:[#allocation5 + $0x8] sm:$0xff]
      %v276 = vld [vmem:[#allocation2] sm:$0xff]
      %v277 = vld [vmem:[#allocation2 + $0x8] sm:$0xff]
      %v278 = vld [vmem:[#allocation3] sm:$0xff]
      %v279 = vld [vmem:[#allocation3 + $0x8] sm:$0xff]
      %v280 = vmax.f32 %v278, 1e-30
      %v281 = vmax.f32 %v279, 1e-30
      %v282 = vlog2.pop %v280
      %v283 = vmul.f32 %v282, 0.6931472
      %v284 = vlog2.pop %v281
      %v285 = vmul.f32 %v284, 0.6931472
      %v286 = vadd.f32 %v276, %v283
      %v287 = vadd.f32 %v277, %v285
      %v288 = vld [vmem:[#allocation4] sm:$0xff]
      %v289 = vld [vmem:[#allocation4 + $0x8] sm:$0xff]
      %v290 = vmul.f32 %v274, %v286
      %v291 = vmul.f32 %v275, %v287
      %v292 = vsub.f32 %v288, %v290
      %v293 = vsub.f32 %v289, %v291
      %v294 = vmax.f32 %v274, 1.0
      %v295 = vmax.f32 %v275, 1.0
      %v296 = vrcp.pop %v294
      %v297 = vmul.f32 %v292, %v296
      %v298 = vrcp.pop %v295
      %v299 = vmul.f32 %v293, %v298
      %vm300 = vcmp.lt.s32.totalorder %v165, 16
      %vm301 = vcmp.lt.s32.totalorder %v166, 16
      %v302 = vsel %vm300, %v297, 0.0
      %v303 = vsel %vm301, %v299, 0.0
      %304 = vst.msk [vmem:[%s4] sm:$0xff] %vm240, %v302
      %305 = vst.msk [vmem:[%s4 + $0x8] sm:$0xff] %vm240, %v303
    $region29: #{tpu_custom_call.1} parent=1 // pred_fallthru
      _
    // Predicated region
    $region30: #{tpu_custom_call.1} parent=1 // pred_check
      _
    $region31: #{tpu_custom_call.1} parent=1 // pred_check_branch
      %307 = sbr.rel (0) target = $region33
    $region32: #{tpu_custom_call.1} parent=1 // pred_region
      _
    $region33: #{tpu_custom_call.1} parent=1 // pred_fallthru
      _
    // Predicated region
    $region34: #{tpu_custom_call.1} parent=1 // pred_check
      _
    $region35: #{tpu_custom_call.1} parent=1 // pred_check_branch
      %309 = sbr.rel (0) target = $region37
    $region36: #{tpu_custom_call.1} parent=1 // pred_region
      _
    $region37: #{tpu_custom_call.1} parent=1 // pred_fallthru
      _
    %310 = vsyncpa [#allocation7], 1

</llo_original>
